<compile_context>
chip_gen: v7x
topology: tpu7x:2x2x1
jax: 0.10.0
libtpu: 0.0.40
codegen_flags: <defaults>
</compile_context>

<pallas_src>
import math
import functools

import jax
import jax.numpy as jnp
from jax import lax
from jax.experimental import pallas as pl
from jax.experimental.pallas import tpu as pltpu

NOISY_LAYER_STD = 0.1  # Config.NOISY_LAYER_STD in the reference DeepRL repo


def _round_up(n, m):
    return ((n + m - 1) // m) * m


# ---------------------------------------------------------------------------
# Pallas kernels
# ---------------------------------------------------------------------------
def _noisy_train_kernel(x_ref, wmu_ref, wsig_ref, eout_ref, ein_ref,
                        bmu_ref, bsig_ref, beps_ref, o_ref, acc_ref,
                        *, mxu_bf16):
    k = pl.program_id(2)

    @pl.when(k == 0)
    def _():
        acc_ref[...] = jnp.zeros_like(acc_ref)

    # Factorized noise rebuilt on the VPU (f32): eps[o, i] = eps_out[o] * eps_in[i]
    eps = eout_ref[...] * ein_ref[...]                    # (tn,1)*(1,tk) -> (tn,tk)
    w = wmu_ref[...] + wsig_ref[...] * eps                # effective weight tile
    x = x_ref[...]
    if mxu_bf16:                                          # static Python flag
        w = w.astype(jnp.bfloat16)
        x = x.astype(jnp.bfloat16)
    # Contract over in_features of both operands -> no transpose of w needed.
    acc_ref[...] += lax.dot_general(
        x, w, dimension_numbers=(((1,), (1,)), ((), ())),
        preferred_element_type=jnp.float32)

    @pl.when(k == pl.num_programs(2) - 1)
    def _():
        b = bmu_ref[...] + bsig_ref[...] * beps_ref[...]  # (1, tn)
        o_ref[...] = (acc_ref[...] + b).astype(o_ref.dtype)


def _mu_only_kernel(x_ref, wmu_ref, bmu_ref, o_ref, acc_ref, *, mxu_bf16):
    k = pl.program_id(2)

    @pl.when(k == 0)
    def _():
        acc_ref[...] = jnp.zeros_like(acc_ref)

    x = x_ref[...]
    w = wmu_ref[...]
    if mxu_bf16:
        x = x.astype(jnp.bfloat16)
        w = w.astype(jnp.bfloat16)
    acc_ref[...] += lax.dot_general(
        x, w, dimension_numbers=(((1,), (1,)), ((), ())),
        preferred_element_type=jnp.float32)

    @pl.when(k == pl.num_programs(2) - 1)
    def _():
        o_ref[...] = (acc_ref[...] + bmu_ref[...]).astype(o_ref.dtype)


# ---------------------------------------------------------------------------
# Wrapper
# ---------------------------------------------------------------------------
def noisy_linear_forward(x, weight_mu, weight_sigma, eps_in, eps_out,
                         bias_mu, bias_sigma, bias_epsilon, *,
                         training=True, mxu_bf16=False,
                         tm=128, tn=256, tk=512):
    """Pallas implementation of NoisyLinear.forward.

    x:                (B, in_features)  float32
    weight_mu/sigma:  (out_features, in_features)
    eps_in:           (in_features,)   = f(noise_in)          (transformed factor)
    eps_out:          (out_features,)  = f(noise_out_weight)  (transformed factor)
    bias_*:           (out_features,)
    returns:          (B, out_features)
    (weight_epsilon of the torch module == outer(eps_out, eps_in).)
    """
    B, in_f = x.shape
    out_f = weight_mu.shape[0]
    dtype = x.dtype

    # Clamp tiles to the (hardware-aligned) problem size, keep alignment.
    tm = min(tm, _round_up(B, 8))
    tn = min(tn, _round_up(out_f, 128))
    tk = min(tk, _round_up(in_f, 128))

    Bp = _round_up(B, tm)
    outp = _round_up(out_f, tn)
    inp = _round_up(in_f, tk)

    # Pad once in the wrapper so the kernel only sees lane/sublane-dense tiles.
    x_p = jnp.pad(x, ((0, Bp - B), (0, inp - in_f)))
    wmu_p = jnp.pad(weight_mu, ((0, outp - out_f), (0, inp - in_f)))
    bmu_p = jnp.pad(bias_mu, (0, outp - out_f)).reshape(1, outp)

    grid = (Bp // tm, outp // tn, inp // tk)

    x_spec = pl.BlockSpec((tm, tk), lambda i, j, k: (i, k))
    w_spec = pl.BlockSpec((tn, tk), lambda i, j, k: (j, k))
    bvec_spec = pl.BlockSpec((1, tn), lambda i, j, k: (0, j))
    out_spec = pl.BlockSpec((tm, tn), lambda i, j, k: (i, j))

    cparams = pltpu.CompilerParams(
        dimension_semantics=("parallel", "parallel", "arbitrary"))

    if training:
        wsig_p = jnp.pad(weight_sigma, ((0, outp - out_f), (0, inp - in_f)))
        eout_p = jnp.pad(eps_out, (0, outp - out_f)).reshape(outp, 1)
        ein_p = jnp.pad(eps_in, (0, inp - in_f)).reshape(1, inp)
        bsig_p = jnp.pad(bias_sigma, (0, outp - out_f)).reshape(1, outp)
        beps_p = jnp.pad(bias_epsilon, (0, outp - out_f)).reshape(1, outp)

        out_p = pl.pallas_call(
            functools.partial(_noisy_train_kernel, mxu_bf16=mxu_bf16),
            out_shape=jax.ShapeDtypeStruct((Bp, outp), dtype),
            grid=grid,
            in_specs=[
                x_spec,                                       # x
                w_spec,                                       # weight_mu
                w_spec,                                       # weight_sigma
                pl.BlockSpec((tn, 1), lambda i, j, k: (j, 0)),  # eps_out
                pl.BlockSpec((1, tk), lambda i, j, k: (0, k)),  # eps_in
                bvec_spec, bvec_spec, bvec_spec,              # bias mu/sigma/eps
            ],
            out_specs=out_spec,
            scratch_shapes=[pltpu.VMEM((tm, tn), jnp.float32)],
            compiler_params=cparams,
        )(x_p, wmu_p, wsig_p, eout_p, ein_p, bmu_p, bsig_p, beps_p)
    else:
        # Static mu-only eval path: no noise tensors shipped, no noise fma.
        out_p = pl.pallas_call(
            functools.partial(_mu_only_kernel, mxu_bf16=mxu_bf16),
            out_shape=jax.ShapeDtypeStruct((Bp, outp), dtype),
            grid=grid,
            in_specs=[x_spec, w_spec, bvec_spec],
            out_specs=out_spec,
            scratch_shapes=[pltpu.VMEM((tm, tn), jnp.float32)],
            compiler_params=cparams,
        )(x_p, wmu_p, bmu_p)

    return out_p[:B, :out_f]


# ---------------------------------------------------------------------------
# Deterministic parameter / noise construction (mirrors __init__ + reset_*)
# ---------------------------------------------------------------------------
def _transform_noise(x):
    # x.sign() * x.abs().sqrt()
    return jnp.sign(x) * jnp.sqrt(jnp.abs(x))


def make_noisy_linear_params(key, in_features, out_features, std_init=0.4):
    k_wmu, k_bmu, k_nin, k_now, k_nob = jax.random.split(key, 5)
    mu_range = 1.0 / math.sqrt(in_features)

    weight_mu = jax.random.uniform(
        k_wmu, (out_features, in_features), jnp.float32, -mu_range, mu_range)
    bias_mu = jax.random.uniform(
        k_bmu, (out_features,), jnp.float32, -mu_range, mu_range)
    weight_sigma = jnp.full((out_features, in_features),
                            std_init / math.sqrt(in_features), jnp.float32)
    bias_sigma = jnp.full((out_features,),
                          std_init / math.sqrt(out_features), jnp.float32)

    # reset_noise(): keep the FACTORS of the factorized Gaussian noise; the kernel
    # rebuilds weight_epsilon = outer(eps_out, eps_in) on-chip.
    noise_in = NOISY_LAYER_STD * jax.random.normal(k_nin, (in_features,), jnp.float32)
    noise_out_weight = NOISY_LAYER_STD * jax.random.normal(k_now, (out_features,), jnp.float32)
    noise_out_bias = NOISY_LAYER_STD * jax.random.normal(k_nob, (out_features,), jnp.float32)

    eps_in = _transform_noise(noise_in)
    eps_out = _transform_noise(noise_out_weight)
    bias_epsilon = _transform_noise(noise_out_bias)

    return dict(weight_mu=weight_mu, weight_sigma=weight_sigma,
                bias_mu=bias_mu, bias_sigma=bias_sigma,
                eps_in=eps_in, eps_out=eps_out, bias_epsilon=bias_epsilon)


# ---------------------------------------------------------------------------
# Main
# ---------------------------------------------------------------------------
if __name__ == "__main__":
    key = jax.random.PRNGKey(0)
    k_params, k_x = jax.random.split(key)

    batch = 2
    in_features = 32
    out_features = 32

    params = make_noisy_linear_params(k_params, in_features, out_features)
    x = jax.random.normal(k_x, (batch, in_features), jnp.float32)

    # Training-mode forward (noisy weights) — default module semantics, f32 MXU.
    out = jax.block_until_ready(noisy_linear_forward(
        x, params["weight_mu"], params["weight_sigma"],
        params["eps_in"], params["eps_out"],
        params["bias_mu"], params["bias_sigma"], params["bias_epsilon"],
        training=True))

    # Pure-JAX reference (materializes the full epsilon matrix like the torch buffer).
    weight_epsilon = jnp.outer(params["eps_out"], params["eps_in"])
    w_ref = params["weight_mu"] + params["weight_sigma"] * weight_epsilon
    b_ref = params["bias_mu"] + params["bias_sigma"] * params["bias_epsilon"]
    ref = x @ w_ref.T + b_ref
    assert out.shape == (batch, out_features)
    assert jnp.allclose(out, ref, atol=1e-5, rtol=1e-5), "train-mode mismatch vs reference"

    # Eval-mode forward (mu only): static branch -> mu-only kernel.
    out_eval = jax.block_until_ready(noisy_linear_forward(
        x, params["weight_mu"], params["weight_sigma"],
        params["eps_in"], params["eps_out"],
        params["bias_mu"], params["bias_sigma"], params["bias_epsilon"],
        training=False))
    ref_eval = x @ params["weight_mu"].T + params["bias_mu"]
    assert jnp.allclose(out_eval, ref_eval, atol=1e-5, rtol=1e-5), "eval-mode mismatch"

    # Optional bf16-MXU path (v6e/v7x friendly): f32 VPU noise fma, bf16 matmul operands.
    out_bf16 = jax.block_until_ready(noisy_linear_forward(
        x, params["weight_mu"], params["weight_sigma"],
        params["eps_in"], params["eps_out"],
        params["bias_mu"], params["bias_sigma"], params["bias_epsilon"],
        training=True, mxu_bf16=True))
    assert jnp.allclose(out_bf16, ref, atol=3e-2, rtol=3e-2), "bf16-MXU mismatch"

    print("KERNEL_OK")
</pallas_src>

<mosaic_0001>
module attributes {stable_mosaic.version = 11 : i64} {
  func.func @_noisy_train_kernel(%arg0: i32, %arg1: i32, %arg2: i32, %arg3: memref<8x128xf32, #tpu.memory_space<vmem>>, %arg4: memref<128x128xf32, #tpu.memory_space<vmem>>, %arg5: memref<128x128xf32, #tpu.memory_space<vmem>>, %arg6: memref<128x1xf32, #tpu.memory_space<vmem>>, %arg7: memref<1x128xf32, #tpu.memory_space<vmem>>, %arg8: memref<1x128xf32, #tpu.memory_space<vmem>>, %arg9: memref<1x128xf32, #tpu.memory_space<vmem>>, %arg10: memref<1x128xf32, #tpu.memory_space<vmem>>, %arg11: memref<8x128xf32, #tpu.memory_space<vmem>>, %arg12: memref<8x128xf32, #tpu.memory_space<vmem>>) attributes {dimension_semantics = [#tpu.dimension_semantics<parallel>, #tpu.dimension_semantics<parallel>, #tpu.dimension_semantics<arbitrary>], iteration_bounds = array<i64: 1, 1, 1>, scalar_prefetch = 0 : i64, scratch_operands = 1 : i64, tpu.core_type = #tpu.core_type<tc>, window_params = [{transform_indices = @transform_0, window_bounds = array<i64: 8, 128>}, {transform_indices = @transform_1, window_bounds = array<i64: 128, 128>}, {transform_indices = @transform_2, window_bounds = array<i64: 128, 128>}, {transform_indices = @transform_3, window_bounds = array<i64: 128, 1>}, {transform_indices = @transform_4, window_bounds = array<i64: 1, 128>}, {transform_indices = @transform_5, window_bounds = array<i64: 1, 128>}, {transform_indices = @transform_6, window_bounds = array<i64: 1, 128>}, {transform_indices = @transform_7, window_bounds = array<i64: 1, 128>}, {transform_indices = @transform_8, window_bounds = array<i64: 8, 128>}]} {
    %c0_i32 = arith.constant 0 : i32
    %0 = arith.cmpi eq, %arg2, %c0_i32 : i32
    %1 = arith.extui %0 : i1 to i32
    %c0_i32_0 = arith.constant 0 : i32
    %2 = arith.cmpi ne, %1, %c0_i32_0 : i32
    scf.if %2 {
      %cst_16 = arith.constant 0.000000e+00 : f32
      %20 = vector.broadcast %cst_16 : f32 to vector<8x128xf32>
      %c0_17 = arith.constant 0 : index
      %c0_18 = arith.constant 0 : index
      %21 = vector.load %arg12[%c0_17, %c0_18] : memref<8x128xf32, #tpu.memory_space<vmem>>, vector<8x128xf32>
      tpu.vector_store %arg12[%c0_17, %c0_18], %20 {strides = array<i32>} : memref<8x128xf32, #tpu.memory_space<vmem>>, vector<8x128xf32>,
    } else {
    }
    %c0 = arith.constant 0 : index
    %c0_1 = arith.constant 0 : index
    %3 = vector.load %arg6[%c0, %c0_1] : memref<128x1xf32, #tpu.memory_space<vmem>>, vector<128x1xf32>
    %c0_2 = arith.constant 0 : index
    %c0_3 = arith.constant 0 : index
    %4 = vector.load %arg7[%c0_2, %c0_3] : memref<1x128xf32, #tpu.memory_space<vmem>>, vector<1x128xf32>
    %5 = vector.broadcast %3 : vector<128x1xf32> to vector<128x128xf32>
    %6 = vector.broadcast %4 : vector<1x128xf32> to vector<128x128xf32>
    %7 = arith.mulf %5, %6 : vector<128x128xf32>
    %c0_4 = arith.constant 0 : index
    %c0_5 = arith.constant 0 : index
    %8 = vector.load %arg4[%c0_4, %c0_5] : memref<128x128xf32, #tpu.memory_space<vmem>>, vector<128x128xf32>
    %c0_6 = arith.constant 0 : index
    %c0_7 = arith.constant 0 : index
    %9 = vector.load %arg5[%c0_6, %c0_7] : memref<128x128xf32, #tpu.memory_space<vmem>>, vector<128x128xf32>
    %10 = arith.mulf %9, %7 : vector<128x128xf32>
    %11 = arith.addf %8, %10 : vector<128x128xf32>
    %c0_8 = arith.constant 0 : index
    %c0_9 = arith.constant 0 : index
    %12 = vector.load %arg3[%c0_8, %c0_9] : memref<8x128xf32, #tpu.memory_space<vmem>>, vector<8x128xf32>
    %c0_10 = arith.constant 0 : index
    %c0_11 = arith.constant 0 : index
    %13 = vector.load %arg12[%c0_10, %c0_11] : memref<8x128xf32, #tpu.memory_space<vmem>>, vector<8x128xf32>
    %cst = arith.constant dense<0.000000e+00> : vector<8x128xf32>
    %14 = tpu.matmul %12, %11, %cst {dimension_numbers = #tpu.dot_dimension_numbers<[1], [1], [0], [0], [0, 0, 1, 0], [], []>} : vector<8x128xf32>, vector<128x128xf32>, vector<8x128xf32> -> vector<8x128xf32>
    %15 = arith.addf %13, %14 : vector<8x128xf32>
    %c0_12 = arith.constant 0 : index
    %c0_13 = arith.constant 0 : index
    %16 = vector.load %arg12[%c0_12, %c0_13] : memref<8x128xf32, #tpu.memory_space<vmem>>, vector<8x128xf32>
    tpu.vector_store %arg12[%c0_12, %c0_13], %15 {strides = array<i32>} : memref<8x128xf32, #tpu.memory_space<vmem>>, vector<8x128xf32>,
    %c0_i32_14 = arith.constant 0 : i32
    %17 = arith.cmpi eq, %arg2, %c0_i32_14 : i32
    %18 = arith.extui %17 : i1 to i32
    %c0_i32_15 = arith.constant 0 : i32
    %19 = arith.cmpi ne, %18, %c0_i32_15 : i32
    scf.if %19 {
      %c0_16 = arith.constant 0 : index
      %c0_17 = arith.constant 0 : index
      %20 = vector.load %arg8[%c0_16, %c0_17] : memref<1x128xf32, #tpu.memory_space<vmem>>, vector<1x128xf32>
      %c0_18 = arith.constant 0 : index
      %c0_19 = arith.constant 0 : index
      %21 = vector.load %arg9[%c0_18, %c0_19] : memref<1x128xf32, #tpu.memory_space<vmem>>, vector<1x128xf32>
      %c0_20 = arith.constant 0 : index
      %c0_21 = arith.constant 0 : index
      %22 = vector.load %arg10[%c0_20, %c0_21] : memref<1x128xf32, #tpu.memory_space<vmem>>, vector<1x128xf32>
      %23 = arith.mulf %21, %22 : vector<1x128xf32>
      %24 = arith.addf %20, %23 : vector<1x128xf32>
      %c0_22 = arith.constant 0 : index
      %c0_23 = arith.constant 0 : index
      %25 = vector.load %arg12[%c0_22, %c0_23] : memref<8x128xf32, #tpu.memory_space<vmem>>, vector<8x128xf32>
      %26 = vector.broadcast %24 : vector<1x128xf32> to vector<8x128xf32>
      %27 = arith.addf %25, %26 : vector<8x128xf32>
      %c0_24 = arith.constant 0 : index
      %c0_25 = arith.constant 0 : index
      %28 = vector.load %arg11[%c0_24, %c0_25] : memref<8x128xf32, #tpu.memory_space<vmem>>, vector<8x128xf32>
      tpu.vector_store %arg11[%c0_24, %c0_25], %27 {strides = array<i32>} : memref<8x128xf32, #tpu.memory_space<vmem>>, vector<8x128xf32>,
    } else {
    }
    return
  }
  func.func @transform_0(%arg0: i32, %arg1: i32, %arg2: i32) -> (i32, i32) {
    %c0_i32 = arith.constant 0 : i32
    return %arg0, %arg2 : i32, i32
  }
  func.func @transform_1(%arg0: i32, %arg1: i32, %arg2: i32) -> (i32, i32) {
    %c0_i32 = arith.constant 0 : i32
    return %arg1, %arg2 : i32, i32
  }
  func.func @transform_2(%arg0: i32, %arg1: i32, %arg2: i32) -> (i32, i32) {
    %c0_i32 = arith.constant 0 : i32
    return %arg1, %arg2 : i32, i32
  }
  func.func @transform_3(%arg0: i32, %arg1: i32, %arg2: i32) -> (i32, i32) {
    %c0_i32 = arith.constant 0 : i32
    %c0_i32_0 = arith.constant 0 : i32
    return %arg1, %c0_i32 : i32, i32
  }
  func.func @transform_4(%arg0: i32, %arg1: i32, %arg2: i32) -> (i32, i32) {
    %c0_i32 = arith.constant 0 : i32
    %c0_i32_0 = arith.constant 0 : i32
    return %c0_i32, %arg2 : i32, i32
  }
  func.func @transform_5(%arg0: i32, %arg1: i32, %arg2: i32) -> (i32, i32) {
    %c0_i32 = arith.constant 0 : i32
    %c0_i32_0 = arith.constant 0 : i32
    return %c0_i32, %arg1 : i32, i32
  }
  func.func @transform_6(%arg0: i32, %arg1: i32, %arg2: i32) -> (i32, i32) {
    %c0_i32 = arith.constant 0 : i32
    %c0_i32_0 = arith.constant 0 : i32
    return %c0_i32, %arg1 : i32, i32
  }
  func.func @transform_7(%arg0: i32, %arg1: i32, %arg2: i32) -> (i32, i32) {
    %c0_i32 = arith.constant 0 : i32
    %c0_i32_0 = arith.constant 0 : i32
    return %c0_i32, %arg1 : i32, i32
  }
  func.func @transform_8(%arg0: i32, %arg1: i32, %arg2: i32) -> (i32, i32) {
    %c0_i32 = arith.constant 0 : i32
    return %arg0, %arg1 : i32, i32
  }
}

</mosaic_0001>

<llo_original>
// kernel: tpu_custom_call.1
$region0: #{tpu_custom_call.1}
  #allocation0 [shape = 'u32[]', space=smem, size = 0x4, offset = 0x4, fixed_abs, tag = 'smem constant byte address 0x4 - core index']
  #allocation1 [shape = 'u32[144,128]{1,0:T(1,128)}', space=vmem, size = 0x12000, scoped, tag = 'internal scratch']
  #allocation2 [shape = 'f32[8,128]{1,0:T(8,128)}', space=vmem, size = 0x1000, scoped, tag = 'scratch operand']
  %s0 = inlined_call_operand.hbm [shape: f32[8,128], index: 0, kind: input, shape index: {}]
  %s1 = inlined_call_operand.vmem [shape: f32[128,128], index: 1, kind: input, shape index: {}]
  %s2 = inlined_call_operand.hbm [shape: f32[128,128], index: 2, kind: input, shape index: {}]
  %s3 = inlined_call_operand.vmem [shape: f32[128,1], index: 3, kind: input, shape index: {}]
  %s4 = inlined_call_operand.vmem [shape: f32[1,128], index: 4, kind: input, shape index: {}]
  %s5 = inlined_call_operand.vmem [shape: f32[1,128], index: 5, kind: input, shape index: {}]
  %s6 = inlined_call_operand.vmem [shape: f32[1,128], index: 6, kind: input, shape index: {}]
  %s7 = inlined_call_operand.vmem [shape: f32[1,128], index: 7, kind: input, shape index: {}]
  %s8 = inlined_call_operand.hbm [shape: f32[8,128], index: 8, kind: output, shape index: {}]
  %s9 = sld [smem:[#allocation0]]
  $region58: #{tpu_custom_call.1} parent=0
    _
  %s11 = ssub.s32 1, %s9
  %s12 = scalar_select 0, %s11, %s9
  $region1: #{tpu_custom_call.1} parent=0
    #allocation3 [shape = 'u8[4096]{0}', space=vmem, size = 0x1000, scoped, tag = 'input window, operand 0, single buffered']
    #allocation4 [shape = 's32[1]{0}', space=sflag, size = 0x4, scoped, tag = 'scoped memory for tpu_custom_call.1']
    #allocation5 [shape = 's32[1]{0}', space=sflag, size = 0x4, scoped, tag = 'scoped memory for tpu_custom_call.1']
    #allocation6 [shape = 'u8[65536]{0}', space=vmem, size = 0x10000, scoped, tag = 'input window, operand 2, single buffered']
    #allocation7 [shape = 's32[1]{0}', space=sflag, size = 0x4, scoped, tag = 'scoped memory for tpu_custom_call.1']
    #allocation8 [shape = 'u8[4096]{0}', space=vmem, size = 0x1000, scoped, tag = 'output window, operand 0, single buffered']
    %13 = vsyncpa [#allocation4], 0
    %14 = vsyncpa [#allocation7], 0
    %15 = vsyncpa [#allocation5], 0
    // Predicated region
    $region2: #{tpu_custom_call.1} parent=1 // pred_check
      _
    $region3: #{tpu_custom_call.1} parent=1 // pred_check_branch
      %17 = sbr.rel (0) target = $region5
    $region4: #{tpu_custom_call.1} parent=1 // pred_region
      %s19 = ssub.s32 128, 128
      %20 = vsyncadd [#allocation4], %s19
      %s22 = sshll.u32 [#allocation3], 4
      %s23 = int_to_ptr.vmem [resolvable:$true] %s22
      %25 = dma.hbm_to_vmem [thread:$0]  %s0, 128, %s23, [#allocation4]
    $region5: #{tpu_custom_call.1} parent=1 // pred_fallthru
      _
    // Predicated region
    $region6: #{tpu_custom_call.1} parent=1 // pred_check
      _
    $region7: #{tpu_custom_call.1} parent=1 // pred_check_branch
      %27 = sbr.rel (0) target = $region9
    $region8: #{tpu_custom_call.1} parent=1 // pred_region
      _
    $region9: #{tpu_custom_call.1} parent=1 // pred_fallthru
      _
    // Predicated region
    $region10: #{tpu_custom_call.1} parent=1 // pred_check
      _
    $region11: #{tpu_custom_call.1} parent=1 // pred_check_branch
      %29 = sbr.rel (0) target = $region13
    $region12: #{tpu_custom_call.1} parent=1 // pred_region
      %s31 = ssub.s32 2048, 2048
      %32 = vsyncadd [#allocation7], %s31
      %s33 = sshll.u32 [#allocation6], 4
      %s34 = int_to_ptr.vmem [resolvable:$true] %s33
      %39 = dma.hbm_to_vmem [thread:$0]  %s2, 2048, %s34, [#allocation7], 128, 128, 8
    $region13: #{tpu_custom_call.1} parent=1 // pred_fallthru
      _
    // Predicated region
    $region14: #{tpu_custom_call.1} parent=1 // pred_check
      _
    $region15: #{tpu_custom_call.1} parent=1 // pred_check_branch
      %41 = sbr.rel (0) target = $region17
    $region16: #{tpu_custom_call.1} parent=1 // pred_region
      _
    $region17: #{tpu_custom_call.1} parent=1 // pred_fallthru
      _
    // Predicated region
    $region18: #{tpu_custom_call.1} parent=1 // pred_check
      _
    $region19: #{tpu_custom_call.1} parent=1 // pred_check_branch
      %43 = sbr.rel (0) target = $region21
    $region20: #{tpu_custom_call.1} parent=1 // pred_region
      _
    $region21: #{tpu_custom_call.1} parent=1 // pred_fallthru
      _
    // Predicated region
    $region22: #{tpu_custom_call.1} parent=1 // pred_check
      _
    $region23: #{tpu_custom_call.1} parent=1 // pred_check_branch
      %45 = sbr.rel (0) target = $region25
    $region24: #{tpu_custom_call.1} parent=1 // pred_region
      _
    $region25: #{tpu_custom_call.1} parent=1 // pred_fallthru
      _
    // Predicated region
    $region26: #{tpu_custom_call.1} parent=1 // pred_check
      _
    $region27: #{tpu_custom_call.1} parent=1 // pred_check_branch
      %47 = sbr.rel (0) target = $region29
    $region28: #{tpu_custom_call.1} parent=1 // pred_region
      _
    $region29: #{tpu_custom_call.1} parent=1 // pred_fallthru
      _
    // Predicated region
    $region30: #{tpu_custom_call.1} parent=1 // pred_check
      _
    $region31: #{tpu_custom_call.1} parent=1 // pred_check_branch
      %49 = sbr.rel (0) target = $region33
    $region32: #{tpu_custom_call.1} parent=1 // pred_region
      _
    $region33: #{tpu_custom_call.1} parent=1 // pred_fallthru
      _
    // Predicated region
    $region34: #{tpu_custom_call.1} parent=1 // pred_check
      _
    $region35: #{tpu_custom_call.1} parent=1 // pred_check_branch
      %51 = sbr.rel (0) target = $region37
    $region36: #{tpu_custom_call.1} parent=1 // pred_region
      %52 = dma.done [#allocation4], 128
    $region37: #{tpu_custom_call.1} parent=1 // pred_fallthru
      _
    // Predicated region
    $region38: #{tpu_custom_call.1} parent=1 // pred_check
      _
    $region39: #{tpu_custom_call.1} parent=1 // pred_check_branch
      %54 = sbr.rel (0) target = $region41
    $region40: #{tpu_custom_call.1} parent=1 // pred_region
      %55 = dma.done [#allocation7], 2048
    $region41: #{tpu_custom_call.1} parent=1 // pred_fallthru
      _
    %p56 = scmp.eq.s32.totalorder 0, 0
    // Predicated region
    $region42: #{tpu_custom_call.1} parent=1 // pred_check
      %p57 = pneg %p56
    $region43: #{tpu_custom_call.1} parent=1 // pred_check_branch
      %59 = sbr.rel (%p57) target = $region45
    $region44: #{tpu_custom_call.1} parent=1 // pred_region
      %60 = vst [vmem:[#allocation2] sm:$0xff] 0.0
    $region45: #{tpu_custom_call.1} parent=1 // pred_fallthru
      _
    %v61 = vld [vmem:[%s3] sm:$0xff]
    %v62 = vld [vmem:[%s3 + $0x8] sm:$0xff]
    %v63 = vld [vmem:[%s3 + $0x10] sm:$0xff]
    %v64 = vld [vmem:[%s3 + $0x18] sm:$0xff]
    %v65 = vld [vmem:[%s3 + $0x20] sm:$0xff]
    %v66 = vld [vmem:[%s3 + $0x28] sm:$0xff]
    %v67 = vld [vmem:[%s3 + $0x30] sm:$0xff]
    %v68 = vld [vmem:[%s3 + $0x38] sm:$0xff]
    %v69 = vld [vmem:[%s3 + $0x40] sm:$0xff]
    %v70 = vld [vmem:[%s3 + $0x48] sm:$0xff]
    %v71 = vld [vmem:[%s3 + $0x50] sm:$0xff]
    %v72 = vld [vmem:[%s3 + $0x58] sm:$0xff]
    %v73 = vld [vmem:[%s3 + $0x60] sm:$0xff]
    %v74 = vld [vmem:[%s3 + $0x68] sm:$0xff]
    %v75 = vld [vmem:[%s3 + $0x70] sm:$0xff]
    %v76 = vld [vmem:[%s3 + $0x78] sm:$0xff]
    %v77 = vld [vmem:[%s4] sm:$0x1]
    %79 = vset.pattern.permute.xlu0 0
    %80 = vperm.xlu0 %79, %v61
    %v81 = vpop.permute.xlu0 %80
    %84 = vset.pattern.permute.xlu0 0
    %85 = vperm.xlu0 %84, %v62
    %v86 = vpop.permute.xlu0 %85
    %89 = vset.pattern.permute.xlu0 0
    %90 = vperm.xlu0 %89, %v63
    %v91 = vpop.permute.xlu0 %90
    %94 = vset.pattern.permute.xlu0 0
    %95 = vperm.xlu0 %94, %v64
    %v96 = vpop.permute.xlu0 %95
    %99 = vset.pattern.permute.xlu0 0
    %100 = vperm.xlu0 %99, %v65
    %v101 = vpop.permute.xlu0 %100
    %104 = vset.pattern.permute.xlu0 0
    %105 = vperm.xlu0 %104, %v66
    %v106 = vpop.permute.xlu0 %105
    %109 = vset.pattern.permute.xlu0 0
    %110 = vperm.xlu0 %109, %v67
    %v111 = vpop.permute.xlu0 %110
    %114 = vset.pattern.permute.xlu0 0
    %115 = vperm.xlu0 %114, %v68
    %v116 = vpop.permute.xlu0 %115
    %119 = vset.pattern.permute.xlu0 0
    %120 = vperm.xlu0 %119, %v69
    %v121 = vpop.permute.xlu0 %120
    %124 = vset.pattern.permute.xlu0 0
    %125 = vperm.xlu0 %124, %v70
    %v126 = vpop.permute.xlu0 %125
    %129 = vset.pattern.permute.xlu0 0
    %130 = vperm.xlu0 %129, %v71
    %v131 = vpop.permute.xlu0 %130
    %134 = vset.pattern.permute.xlu0 0
    %135 = vperm.xlu0 %134, %v72
    %v136 = vpop.permute.xlu0 %135
    %139 = vset.pattern.permute.xlu0 0
    %140 = vperm.xlu0 %139, %v73
    %v141 = vpop.permute.xlu0 %140
    %144 = vset.pattern.permute.xlu0 0
    %145 = vperm.xlu0 %144, %v74
    %v146 = vpop.permute.xlu0 %145
    %149 = vset.pattern.permute.xlu0 0
    %150 = vperm.xlu0 %149, %v75
    %v151 = vpop.permute.xlu0 %150
    %154 = vset.pattern.permute.xlu0 0
    %155 = vperm.xlu0 %154, %v76
    %v156 = vpop.permute.xlu0 %155
    %v159 = vlaneseq
    %v160 = vshrl.u32 %v159, 7
    %v161 = vsub.s32 0, %v160
    %v162 = vrot.slane %v77, %v161
    %v164 = vmul.f32 %v81, %v162
    %v165 = vmul.f32 %v86, %v162
    %v166 = vmul.f32 %v91, %v162
    %v167 = vmul.f32 %v96, %v162
    %v168 = vmul.f32 %v101, %v162
    %v169 = vmul.f32 %v106, %v162
    %v170 = vmul.f32 %v111, %v162
    %v171 = vmul.f32 %v116, %v162
    %v172 = vmul.f32 %v121, %v162
    %v173 = vmul.f32 %v126, %v162
    %v174 = vmul.f32 %v131, %v162
    %v175 = vmul.f32 %v136, %v162
    %v176 = vmul.f32 %v141, %v162
    %v177 = vmul.f32 %v146, %v162
    %v178 = vmul.f32 %v151, %v162
    %v179 = vmul.f32 %v156, %v162
    %v180 = vld [vmem:[%s1] sm:$0xff]
    %v181 = vld [vmem:[%s1 + $0x8] sm:$0xff]
    %v182 = vld [vmem:[%s1 + $0x10] sm:$0xff]
    %v183 = vld [vmem:[%s1 + $0x18] sm:$0xff]
    %v184 = vld [vmem:[%s1 + $0x20] sm:$0xff]
    %v185 = vld [vmem:[%s1 + $0x28] sm:$0xff]
    %v186 = vld [vmem:[%s1 + $0x30] sm:$0xff]
    %v187 = vld [vmem:[%s1 + $0x38] sm:$0xff]
    %v188 = vld [vmem:[%s1 + $0x40] sm:$0xff]
    %v189 = vld [vmem:[%s1 + $0x48] sm:$0xff]
    %v190 = vld [vmem:[%s1 + $0x50] sm:$0xff]
    %v191 = vld [vmem:[%s1 + $0x58] sm:$0xff]
    %v192 = vld [vmem:[%s1 + $0x60] sm:$0xff]
    %v193 = vld [vmem:[%s1 + $0x68] sm:$0xff]
    %v194 = vld [vmem:[%s1 + $0x70] sm:$0xff]
    %v195 = vld [vmem:[%s1 + $0x78] sm:$0xff]
    %v196 = vld [vmem:[#allocation6] sm:$0xff]
    %v197 = vld [vmem:[#allocation6 + $0x8] sm:$0xff]
    %v198 = vld [vmem:[#allocation6 + $0x10] sm:$0xff]
    %v199 = vld [vmem:[#allocation6 + $0x18] sm:$0xff]
    %v200 = vld [vmem:[#allocation6 + $0x20] sm:$0xff]
    %v201 = vld [vmem:[#allocation6 + $0x28] sm:$0xff]
    %v202 = vld [vmem:[#allocation6 + $0x30] sm:$0xff]
    %v203 = vld [vmem:[#allocation6 + $0x38] sm:$0xff]
    %v204 = vld [vmem:[#allocation6 + $0x40] sm:$0xff]
    %v205 = vld [vmem:[#allocation6 + $0x48] sm:$0xff]
    %v206 = vld [vmem:[#allocation6 + $0x50] sm:$0xff]
    %v207 = vld [vmem:[#allocation6 + $0x58] sm:$0xff]
    %v208 = vld [vmem:[#allocation6 + $0x60] sm:$0xff]
    %v209 = vld [vmem:[#allocation6 + $0x68] sm:$0xff]
    %v210 = vld [vmem:[#allocation6 + $0x70] sm:$0xff]
    %v211 = vld [vmem:[#allocation6 + $0x78] sm:$0xff]
    %v212 = vmul.f32 %v196, %v164
    %v213 = vmul.f32 %v197, %v165
    %v214 = vmul.f32 %v198, %v166
    %v215 = vmul.f32 %v199, %v167
    %v216 = vmul.f32 %v200, %v168
    %v217 = vmul.f32 %v201, %v169
    %v218 = vmul.f32 %v202, %v170
    %v219 = vmul.f32 %v203, %v171
    %v220 = vmul.f32 %v204, %v172
    %v221 = vmul.f32 %v205, %v173
    %v222 = vmul.f32 %v206, %v174
    %v223 = vmul.f32 %v207, %v175
    %v224 = vmul.f32 %v208, %v176
    %v225 = vmul.f32 %v209, %v177
    %v226 = vmul.f32 %v210, %v178
    %v227 = vmul.f32 %v211, %v179
    %v228 = vadd.f32 %v180, %v212
    %v229 = vadd.f32 %v181, %v213
    %v230 = vadd.f32 %v182, %v214
    %v231 = vadd.f32 %v183, %v215
    %v232 = vadd.f32 %v184, %v216
    %v233 = vadd.f32 %v185, %v217
    %v234 = vadd.f32 %v186, %v218
    %v235 = vadd.f32 %v187, %v219
    %v236 = vadd.f32 %v188, %v220
    %v237 = vadd.f32 %v189, %v221
    %v238 = vadd.f32 %v190, %v222
    %v239 = vadd.f32 %v191, %v223
    %v240 = vadd.f32 %v192, %v224
    %v241 = vadd.f32 %v193, %v225
    %v242 = vadd.f32 %v194, %v226
    %v243 = vadd.f32 %v195, %v227
    %v244 = vld [vmem:[#allocation3] sm:$0xff]
    %v245 = vld [vmem:[#allocation2] sm:$0xff]
    %246 = vmatprep.subr.mxu0 0.0
    %247 = vmatpush1.xpose.msra.mxu0 %v228
    %248 = vmatprep.subr.mxu0 0.0
    %249 = vmatpush1.xpose.msra.mxu0 %v229
    %250 = vmatprep.subr.mxu0 0.0
    %251 = vmatpush1.xpose.msra.mxu0 %v230
    %252 = vmatprep.subr.mxu0 0.0
    %253 = vmatpush1.xpose.msra.mxu0 %v231
    %254 = vmatprep.subr.mxu0 0.0
    %255 = vmatpush1.xpose.msra.mxu0 %v232
    %256 = vmatprep.subr.mxu0 0.0
    %257 = vmatpush1.xpose.msra.mxu0 %v233
    %258 = vmatprep.subr.mxu0 0.0
    %259 = vmatpush1.xpose.msra.mxu0 %v234
    %260 = vmatprep.subr.mxu0 0.0
    %261 = vmatpush1.xpose.msra.mxu0 %v235
    %262 = vmatprep.subr.mxu0 0.0
    %263 = vmatpush1.xpose.msra.mxu0 %v236
    %264 = vmatprep.subr.mxu0 0.0
    %265 = vmatpush1.xpose.msra.mxu0 %v237
    %266 = vmatprep.subr.mxu0 0.0
    %267 = vmatpush1.xpose.msra.mxu0 %v238
    %268 = vmatprep.subr.mxu0 0.0
    %269 = vmatpush1.xpose.msra.mxu0 %v239
    %270 = vmatprep.subr.mxu0 0.0
    %271 = vmatpush1.xpose.msra.mxu0 %v240
    %272 = vmatprep.subr.mxu0 0.0
    %273 = vmatpush1.xpose.msra.mxu0 %v241
    %274 = vmatprep.subr.mxu0 0.0
    %275 = vmatpush1.xpose.msra.mxu0 %v242
    %276 = vmatprep.subr.mxu0 0.0
    %277 = vmatpush1.xpose.msra.mxu0 %v243
    %278 = vmatprep.subr.mxu0 0.0
    %279 = vmatpush1.xpose.msra.mxu0 0.0
    %280 = vmatprep.subr.mxu0 0.0
    %281 = vmatpush1.xpose.msra.mxu0 0.0
    %282 = vmatprep.subr.mxu0 0.0
    %283 = vmatpush1.xpose.msra.mxu0 0.0
    %284 = vmatprep.subr.mxu0 0.0
    %285 = vmatpush1.xpose.msra.mxu0 0.0
    %286 = vmatprep.subr.mxu0 0.0
    %287 = vmatpush1.xpose.msra.mxu0 0.0
    %288 = vmatprep.subr.mxu0 0.0
    %289 = vmatpush1.xpose.msra.mxu0 0.0
    %290 = vmatprep.subr.mxu0 0.0
    %291 = vmatpush1.xpose.msra.mxu0 0.0
    %292 = vmatprep.subr.mxu0 0.0
    %293 = vmatpush1.xpose.msra.mxu0 0.0
    %294 = vmatprep.subr.mxu0 0.0
    %295 = vmatpush1.xpose.msra.mxu0 0.0
    %296 = vmatprep.subr.mxu0 0.0
    %297 = vmatpush1.xpose.msra.mxu0 0.0
    %298 = vmatprep.subr.mxu0 0.0
    %299 = vmatpush1.xpose.msra.mxu0 0.0
    %300 = vmatprep.subr.mxu0 0.0
    %301 = vmatpush1.xpose.msra.mxu0 0.0
    %302 = vmatprep.subr.mxu0 0.0
    %303 = vmatpush1.xpose.msra.mxu0 0.0
    %304 = vmatprep.subr.mxu0 0.0
    %305 = vmatpush1.xpose.msra.mxu0 0.0
    %306 = vmatprep.subr.mxu0 0.0
    %307 = vmatpush1.xpose.msra.mxu0 0.0
    %308 = vmatprep.subr.mxu0 0.0
    %309 = vmatpush1.xpose.msra.mxu0 0.0
    %310 = vmatprep.mubr.f32.mxu0 0.0
    %311 = vmatmul.mubr.f32.gmra.mrb[0].mxu0 %v244
    %v312 = vpop.f32.mrb[0].mxu0
    %v313 = vadd.f32 0.0, %v312
    %v314 = vpop.f32.mrb[0].mxu0
    %315 = vdwg.mxu0
    %v316 = vadd.f32 %v245, %v313
    %317 = vst [vmem:[#allocation2] sm:$0xff] %v316
    // Predicated region
    $region46: #{tpu_custom_call.1} parent=1 // pred_check
      %p318 = pneg %p56
    $region47: #{tpu_custom_call.1} parent=1 // pred_check_branch
      %320 = sbr.rel (%p318) target = $region49
    $region48: #{tpu_custom_call.1} parent=1 // pred_region
      %v321 = vld [vmem:[%s5] sm:$0x1]
      %v322 = vld [vmem:[%s6] sm:$0x1]
      %v323 = vld [vmem:[%s7] sm:$0x1]
      %v324 = vmul.f32 %v322, %v323
      %v325 = vadd.f32 %v321, %v324
      %v326 = vld [vmem:[#allocation2] sm:$0xff]
      %v328 = vlaneseq
      %v329 = vshrl.u32 %v328, 7
      %v330 = vsub.s32 0, %v329
      %v331 = vrot.slane %v325, %v330
      %v333 = vadd.f32 %v326, %v331
      %334 = vst [vmem:[#allocation8] sm:$0xff] %v333
    $region49: #{tpu_custom_call.1} parent=1 // pred_fallthru
      _
    // Predicated region
    $region50: #{tpu_custom_call.1} parent=1 // pred_check
      _
    $region51: #{tpu_custom_call.1} parent=1 // pred_check_branch
      %336 = sbr.rel (0) target = $region53
    $region52: #{tpu_custom_call.1} parent=1 // pred_region
      %s338 = ssub.s32 128, 128
      %339 = vsyncadd [#allocation5], %s338
      %s341 = sshll.u32 [#allocation8], 4
      %s342 = int_to_ptr.vmem [resolvable:$true] %s341
      %344 = dma.vmem_to_hbm [thread:$0]  %s342, 128, %s8, [#allocation5]
    $region53: #{tpu_custom_call.1} parent=1 // pred_fallthru
      _
    // Predicated region
    $region54: #{tpu_custom_call.1} parent=1 // pred_check
      _
    $region55: #{tpu_custom_call.1} parent=1 // pred_check_branch
      %346 = sbr.rel (0) target = $region57
    $region56: #{tpu_custom_call.1} parent=1 // pred_region
      %347 = dma.done [#allocation5], 128
    $region57: #{tpu_custom_call.1} parent=1 // pred_fallthru
      _
    %348 = vsyncpa [#allocation4], 1
    %349 = vsyncpa [#allocation7], 1
    %350 = vsyncpa [#allocation5], 1

</llo_original>
